<compile_context>
chip_gen: v5e
topology: v5e:2x2
jax: 0.10.0
libtpu: 0.0.40
codegen_flags: <defaults>
</compile_context>

<pallas_src>
import jax
import jax.numpy as jnp
import numpy as np
from jax.experimental import pallas as pl
from jax.experimental.pallas import tpu as pltpu

EPS = 1e-5


# --------------------------------------------------------------------------
# Kernels
# --------------------------------------------------------------------------
def ccbn_fused_kernel(x_ref, gain_ref, bias_ref, o_ref):
    """Single-pass BN + class-conditional affine for one channel tile.

    x_ref:    (N, TC, HW)   activation slab
    gain_ref: (N, TC, 1)    1 + Linear_g(y)   (precomputed in wrapper)
    bias_ref: (N, TC, 1)    Linear_b(y)       (precomputed in wrapper)
    """
    xf = x_ref[...].astype(jnp.float32)                       # (N, TC, HW)
    n, _, hw = xf.shape
    cnt = jnp.float32(n * hw)

    m = jnp.sum(xf, axis=(0, 2), keepdims=True) / cnt         # (1, TC, 1)
    d = xf - m                                                 # centered
    var = jnp.sum(d * d, axis=(0, 2), keepdims=True) / cnt    # biased var
    inv_std = jax.lax.rsqrt(var + EPS)                        # (1, TC, 1)

    # out = (x - m) * inv_std * gain + bias = d * scale + bias
    scale = gain_ref[...].astype(jnp.float32) * inv_std       # (N, TC, 1)
    o_ref[...] = (d * scale + bias_ref[...].astype(jnp.float32)).astype(o_ref.dtype)


def ccbn_stats_kernel(x_ref, sum_ref, sumsq_ref):
    """Chunked pass 1: accumulate per-channel sum / sum-of-squares.

    Grid: (C//tc, HW//thw); the hw axis (last, 'arbitrary') accumulates into
    the resident (tc, 1) output blocks.
    """
    @pl.when(pl.program_id(1) == 0)
    def _():
        sum_ref[...] = jnp.zeros_like(sum_ref)
        sumsq_ref[...] = jnp.zeros_like(sumsq_ref)

    xf = x_ref[...].astype(jnp.float32)                       # (N, TC, THW)
    sum_ref[...] += jnp.sum(xf, axis=(0, 2), keepdims=True)[0]        # (TC, 1)
    sumsq_ref[...] += jnp.sum(xf * xf, axis=(0, 2), keepdims=True)[0]  # (TC, 1)


def ccbn_affine_kernel(x_ref, scale_ref, shift_ref, o_ref):
    """Chunked pass 2: out = x * scale + shift (scale/shift per (N, C))."""
    xf = x_ref[...].astype(jnp.float32)                       # (N, TC, THW)
    o_ref[...] = (xf * scale_ref[...] + shift_ref[...]).astype(o_ref.dtype)


# --------------------------------------------------------------------------
# Tiling / VMEM helpers
# --------------------------------------------------------------------------
def _divisors(n):
    ds = []
    i = 1
    while i * i <= n:
        if n % i == 0:
            ds.append(i)
            if i != n // i:
                ds.append(n // i)
        i += 1
    return sorted(ds)


def _legal_channel_tiles(C):
    # Channel tile sits in the sublane slot: needs tc % 8 == 0 or tc == C.
    return [d for d in _divisors(C) if d % 8 == 0 or d == C]


def _legal_hw_tiles(HW):
    # HW tile sits in the lane slot: needs thw % 128 == 0 or thw == HW.
    return [d for d in _divisors(HW) if d % 128 == 0 or d == HW]


def _vmem_capacity_bytes():
    try:
        return int(pltpu.get_tpu_info().vmem_capacity_bytes)
    except Exception:
        return 128 << 20  # v5e/v6e physical VMEM as a conservative default


def _block_budget_bytes(itemsize, vmem_cap):
    # Per-step working set ~ 2x in + 2x out double-buffered blocks (native
    # dtype) + ~3 f32 temporaries of one block each; keep under ~75% of
    # physical VMEM.  f32: cap/7 (~13.7 MiB v6e, ~6.9 MiB v7x); bf16: cap/10.
    f32_factor = 4.0 / itemsize
    return max(1 << 20, int(0.75 * vmem_cap / (4.0 + 3.0 * f32_factor)))


def _vmem_limit(block_bytes, elems_per_block, vmem_cap):
    f32_block = elems_per_block * 4
    limit = 4 * block_bytes + 3 * f32_block + (2 << 20)
    return int(min(max(limit, 16 << 20), int(0.9 * vmem_cap)))


def _pick_channel_tile(N, C, HW, itemsize, budget):
    """Fast path tile: full HW per block.  Returns None if nothing fits."""
    per_channel = N * HW * itemsize
    fitting = [d for d in _legal_channel_tiles(C) if d * per_channel <= budget]
    if not fitting:
        return None
    # Prefer >= 2 grid steps so v7x megacore can use both TensorCores
    # (one extra grid step ~0.35us is negligible on v5e/v6e).
    multi = [d for d in fitting if C // d >= 2]
    return max(multi) if multi else max(fitting)


def _pick_chunked_tiles(N, C, HW, itemsize, budget):
    tc_cands = _legal_channel_tiles(C)
    thw_cands = _legal_hw_tiles(HW)
    tc = min(tc_cands)
    fit_thw = [d for d in thw_cands if N * tc * d * itemsize <= budget]
    thw = max(fit_thw) if fit_thw else min(thw_cands)
    fit_tc = [d for d in tc_cands if N * d * thw * itemsize <= budget]
    if fit_tc:
        multi = [d for d in fit_tc if C // d >= 2]
        tc = max(multi) if multi else max(fit_tc)
    return tc, thw


# --------------------------------------------------------------------------
# Wrappers
# --------------------------------------------------------------------------
def _ccbn_fused(x, gain, bias, tc, itemsize, vmem_cap):
    N, C, HW = x.shape
    block_bytes = N * tc * HW * itemsize
    vmem_limit = _vmem_limit(block_bytes, N * tc * HW, vmem_cap)
    cost = pl.CostEstimate(
        flops=6 * N * C * HW,
        transcendentals=0,
        bytes_accessed=2 * N * C * HW * itemsize + 2 * N * C * 4,
    )
    return pl.pallas_call(
        ccbn_fused_kernel,
        out_shape=jax.ShapeDtypeStruct((N, C, HW), x.dtype),
        grid=(C // tc,),
        in_specs=[
            pl.BlockSpec((N, tc, HW), lambda c: (0, c, 0)),
            pl.BlockSpec((N, tc, 1), lambda c: (0, c, 0)),
            pl.BlockSpec((N, tc, 1), lambda c: (0, c, 0)),
        ],
        out_specs=pl.BlockSpec((N, tc, HW), lambda c: (0, c, 0)),
        compiler_params=pltpu.CompilerParams(
            dimension_semantics=("parallel",),
            vmem_limit_bytes=vmem_limit,
        ),
        cost_estimate=cost,
    )(x, gain[:, :, None], bias[:, :, None])


def _ccbn_chunked(x, gain, bias, itemsize, vmem_cap, budget):
    """Two-pass path for N*HW too large for a single-channel-tile block."""
    N, C, HW = x.shape
    tc, thw = _pick_chunked_tiles(N, C, HW, itemsize, budget)
    grid = (C // tc, HW // thw)
    block_bytes = N * tc * thw * itemsize
    vmem_limit = _vmem_limit(block_bytes, N * tc * thw, vmem_cap)

    # Pass 1: per-channel sum / sumsq (output blocks resident across hw axis).
    s, s2 = pl.pallas_call(
        ccbn_stats_kernel,
        out_shape=(jax.ShapeDtypeStruct((C, 1), jnp.float32),
                   jax.ShapeDtypeStruct((C, 1), jnp.float32)),
        grid=grid,
        in_specs=[pl.BlockSpec((N, tc, thw), lambda c, h: (0, c, h))],
        out_specs=(pl.BlockSpec((tc, 1), lambda c, h: (c, 0)),
                   pl.BlockSpec((tc, 1), lambda c, h: (c, 0))),
        compiler_params=pltpu.CompilerParams(
            dimension_semantics=("parallel", "arbitrary"),
            vmem_limit_bytes=vmem_limit,
        ),
        cost_estimate=pl.CostEstimate(
            flops=3 * N * C * HW,
            transcendentals=0,
            bytes_accessed=N * C * HW * itemsize + 2 * C * 4,
        ),
    )(x)

    cnt = jnp.float32(N * HW)
    mean = s[:, 0] / cnt                                         # (C,)
    var = jnp.maximum(s2[:, 0] / cnt - mean * mean, 0.0)         # guard cancellation
    inv_std = jax.lax.rsqrt(var + EPS)                           # (C,)
    scale = gain * inv_std[None, :]                              # (N, C)
    shift = bias - mean[None, :] * scale                         # (N, C)

    # Pass 2: fused affine.
    return pl.pallas_call(
        ccbn_affine_kernel,
        out_shape=jax.ShapeDtypeStruct((N, C, HW), x.dtype),
        grid=grid,
        in_specs=[
            pl.BlockSpec((N, tc, thw), lambda c, h: (0, c, h)),
            pl.BlockSpec((N, tc, 1), lambda c, h: (0, c, 0)),
            pl.BlockSpec((N, tc, 1), lambda c, h: (0, c, 0)),
        ],
        out_specs=pl.BlockSpec((N, tc, thw), lambda c, h: (0, c, h)),
        compiler_params=pltpu.CompilerParams(
            dimension_semantics=("parallel", "parallel"),
            vmem_limit_bytes=vmem_limit,
        ),
        cost_estimate=pl.CostEstimate(
            flops=2 * N * C * HW,
            transcendentals=0,
            bytes_accessed=2 * N * C * HW * itemsize + 2 * N * C * 4,
        ),
    )(x, scale[:, :, None], shift[:, :, None])


def ccbn_forward(x_nchw, y, wg, bg, wb, bb, *, block_budget_bytes=None):
    """x_nchw: (N, C, H, W); y: (N, D); wg/wb: (C, D); bg/bb: (C,)."""
    N, C, H, W = x_nchw.shape
    HW = H * W
    x = x_nchw.reshape(N, C, HW)
    itemsize = jnp.dtype(x.dtype).itemsize

    vmem_cap = _vmem_capacity_bytes()
    budget = (block_budget_bytes if block_budget_bytes is not None
              else _block_budget_bytes(itemsize, vmem_cap))

    # Hoisted tiny class-conditional linears (kept out of the per-tile body).
    yf = y.astype(jnp.float32)
    gain = 1.0 + yf @ wg.T.astype(jnp.float32) + bg.astype(jnp.float32)  # (N, C)
    bias = yf @ wb.T.astype(jnp.float32) + bb.astype(jnp.float32)        # (N, C)

    tc = _pick_channel_tile(N, C, HW, itemsize, budget)
    if tc is not None:
        out = _ccbn_fused(x, gain, bias, tc, itemsize, vmem_cap)
    else:
        out = _ccbn_chunked(x, gain, bias, itemsize, vmem_cap, budget)
    return out.reshape(N, C, H, W)


# --------------------------------------------------------------------------
# Pure-JAX reference (mirrors the PyTorch training BN path)
# --------------------------------------------------------------------------
def ccbn_reference(x, y, wg, bg, wb, bb):
    xf = x.astype(jnp.float32)
    m = jnp.mean(xf, axis=(0, 2, 3), keepdims=True)
    var = jnp.mean(jnp.square(xf - m), axis=(0, 2, 3), keepdims=True)
    xhat = (xf - m) * jax.lax.rsqrt(var + EPS)
    gain = 1.0 + y @ wg.T + bg                                   # (N, C)
    bias = y @ wb.T + bb                                         # (N, C)
    return (xhat * gain[:, :, None, None] + bias[:, :, None, None]).astype(x.dtype)


if __name__ == "__main__":
    # ccbn(output_size=C, input_size=D); x: (N, C, H, W), y: (N, D)
    N, C, H, W, D = 2, 4, 16, 16, 32

    key = jax.random.PRNGKey(0)
    kx, ky, kwg, kbg, kwb, kbb = jax.random.split(key, 6)

    x = jax.random.normal(kx, (N, C, H, W), dtype=jnp.float32)
    y = jax.random.normal(ky, (N, D), dtype=jnp.float32)

    # Deterministic nn.Linear-style init: U(-1/sqrt(D), 1/sqrt(D)).
    bound = 1.0 / np.sqrt(D)
    wg = jax.random.uniform(kwg, (C, D), minval=-bound, maxval=bound, dtype=jnp.float32)
    bg = jax.random.uniform(kbg, (C,), minval=-bound, maxval=bound, dtype=jnp.float32)
    wb = jax.random.uniform(kwb, (C, D), minval=-bound, maxval=bound, dtype=jnp.float32)
    bb = jax.random.uniform(kbb, (C,), minval=-bound, maxval=bound, dtype=jnp.float32)

    # Fast (single-pass) path.
    out = jax.block_until_ready(ccbn_forward(x, y, wg, bg, wb, bb))
    ref = jax.block_until_ready(ccbn_reference(x, y, wg, bg, wb, bb))
    assert out.shape == (N, C, H, W)
    np.testing.assert_allclose(np.asarray(out), np.asarray(ref), rtol=1e-5, atol=1e-5)

    # Chunked (two-pass) path, forced via a tiny block budget so it is
    # compiled and validated too.
    C2 = 16
    x2 = jax.random.normal(kx, (N, C2, H, W), dtype=jnp.float32)
    wg2 = jax.random.uniform(kwg, (C2, D), minval=-bound, maxval=bound, dtype=jnp.float32)
    bg2 = jax.random.uniform(kbg, (C2,), minval=-bound, maxval=bound, dtype=jnp.float32)
    wb2 = jax.random.uniform(kwb, (C2, D), minval=-bound, maxval=bound, dtype=jnp.float32)
    bb2 = jax.random.uniform(kbb, (C2,), minval=-bound, maxval=bound, dtype=jnp.float32)
    out2 = jax.block_until_ready(
        ccbn_forward(x2, y, wg2, bg2, wb2, bb2, block_budget_bytes=8 << 10))
    ref2 = jax.block_until_ready(ccbn_reference(x2, y, wg2, bg2, wb2, bb2))
    np.testing.assert_allclose(np.asarray(out2), np.asarray(ref2), rtol=1e-5, atol=1e-5)

    print("KERNEL_OK")
</pallas_src>

<mosaic_0001>
module attributes {stable_mosaic.version = 11 : i64} {
  func.func @ccbn_fused_kernel(%arg0: i32, %arg1: memref<2x4x256xf32, #tpu.memory_space<vmem>>, %arg2: memref<2x4x1xf32, #tpu.memory_space<vmem>>, %arg3: memref<2x4x1xf32, #tpu.memory_space<vmem>>, %arg4: memref<2x4x256xf32, #tpu.memory_space<vmem>>) attributes {dimension_semantics = [#tpu.dimension_semantics<parallel>], iteration_bounds = array<i64: 1>, scalar_prefetch = 0 : i64, scratch_operands = 0 : i64, tpu.core_type = #tpu.core_type<tc>, window_params = [{transform_indices = @transform_0, window_bounds = array<i64: 2, 4, 256>}, {transform_indices = @transform_1, window_bounds = array<i64: 2, 4, 1>}, {transform_indices = @transform_2, window_bounds = array<i64: 2, 4, 1>}, {transform_indices = @transform_3, window_bounds = array<i64: 2, 4, 256>}]} {
    %c0 = arith.constant 0 : index
    %c0_0 = arith.constant 0 : index
    %c0_1 = arith.constant 0 : index
    %0 = vector.load %arg1[%c0, %c0_0, %c0_1] : memref<2x4x256xf32, #tpu.memory_space<vmem>>, vector<2x4x256xf32>
    %cst = arith.constant dense<0.000000e+00> : vector<4xf32>
    %1 = vector.multi_reduction <add>, %0, %cst [0, 2] : vector<2x4x256xf32> to vector<4xf32>
    %2 = vector.shape_cast %1 : vector<4xf32> to vector<1x4x1xf32>
    %cst_2 = arith.constant 5.120000e+02 : f32
    %3 = vector.broadcast %cst_2 : f32 to vector<1x4x1xf32>
    %4 = arith.divf %2, %3 : vector<1x4x1xf32>
    %5 = vector.broadcast %4 : vector<1x4x1xf32> to vector<2x4x256xf32>
    %6 = arith.subf %0, %5 : vector<2x4x256xf32>
    %7 = arith.mulf %6, %6 : vector<2x4x256xf32>
    %cst_3 = arith.constant dense<0.000000e+00> : vector<4xf32>
    %8 = vector.multi_reduction <add>, %7, %cst_3 [0, 2] : vector<2x4x256xf32> to vector<4xf32>
    %9 = vector.shape_cast %8 : vector<4xf32> to vector<1x4x1xf32>
    %cst_4 = arith.constant 5.120000e+02 : f32
    %10 = vector.broadcast %cst_4 : f32 to vector<1x4x1xf32>
    %11 = arith.divf %9, %10 : vector<1x4x1xf32>
    %cst_5 = arith.constant 9.99999974E-6 : f32
    %12 = vector.broadcast %cst_5 : f32 to vector<1x4x1xf32>
    %13 = arith.addf %11, %12 : vector<1x4x1xf32>
    %14 = math.rsqrt %13 : vector<1x4x1xf32>
    %c0_6 = arith.constant 0 : index
    %c0_7 = arith.constant 0 : index
    %c0_8 = arith.constant 0 : index
    %15 = vector.load %arg2[%c0_6, %c0_7, %c0_8] : memref<2x4x1xf32, #tpu.memory_space<vmem>>, vector<2x4x1xf32>
    %16 = vector.broadcast %14 : vector<1x4x1xf32> to vector<2x4x1xf32>
    %17 = arith.mulf %15, %16 : vector<2x4x1xf32>
    %18 = vector.broadcast %17 : vector<2x4x1xf32> to vector<2x4x256xf32>
    %19 = arith.mulf %6, %18 : vector<2x4x256xf32>
    %c0_9 = arith.constant 0 : index
    %c0_10 = arith.constant 0 : index
    %c0_11 = arith.constant 0 : index
    %20 = vector.load %arg3[%c0_9, %c0_10, %c0_11] : memref<2x4x1xf32, #tpu.memory_space<vmem>>, vector<2x4x1xf32>
    %21 = vector.broadcast %20 : vector<2x4x1xf32> to vector<2x4x256xf32>
    %22 = arith.addf %19, %21 : vector<2x4x256xf32>
    %c0_12 = arith.constant 0 : index
    %c0_13 = arith.constant 0 : index
    %c0_14 = arith.constant 0 : index
    %23 = vector.load %arg4[%c0_12, %c0_13, %c0_14] : memref<2x4x256xf32, #tpu.memory_space<vmem>>, vector<2x4x256xf32>
    tpu.vector_store %arg4[%c0_12, %c0_13, %c0_14], %22 {strides = array<i32>} : memref<2x4x256xf32, #tpu.memory_space<vmem>>, vector<2x4x256xf32>,
    return
  }
  func.func @transform_0(%arg0: i32) -> (i32, i32, i32) {
    %c0_i32 = arith.constant 0 : i32
    %c0_i32_0 = arith.constant 0 : i32
    %c0_i32_1 = arith.constant 0 : i32
    return %c0_i32, %arg0, %c0_i32_0 : i32, i32, i32
  }
  func.func @transform_1(%arg0: i32) -> (i32, i32, i32) {
    %c0_i32 = arith.constant 0 : i32
    %c0_i32_0 = arith.constant 0 : i32
    %c0_i32_1 = arith.constant 0 : i32
    return %c0_i32, %arg0, %c0_i32_0 : i32, i32, i32
  }
  func.func @transform_2(%arg0: i32) -> (i32, i32, i32) {
    %c0_i32 = arith.constant 0 : i32
    %c0_i32_0 = arith.constant 0 : i32
    %c0_i32_1 = arith.constant 0 : i32
    return %c0_i32, %arg0, %c0_i32_0 : i32, i32, i32
  }
  func.func @transform_3(%arg0: i32) -> (i32, i32, i32) {
    %c0_i32 = arith.constant 0 : i32
    %c0_i32_0 = arith.constant 0 : i32
    %c0_i32_1 = arith.constant 0 : i32
    return %c0_i32, %arg0, %c0_i32_0 : i32, i32, i32
  }
}

</mosaic_0001>

<llo_original>
// kernel: tpu_custom_call.1
$region0: #{tpu_custom_call.1}
  #allocation0 [shape = 'u32[]', space=smem, size = 0x4, offset = 0x4, fixed_abs, tag = 'smem constant byte address 0x4 - core index']
  #allocation1 [shape = 'u32[72,128]{1,0:T(1,128)}', space=vmem, size = 0x9000, scoped, tag = 'internal scratch']
  %s0 = inlined_call_operand.vmem [shape: f32[2,4,256], index: 0, kind: input, shape index: {}]
  %s1 = inlined_call_operand.vmem [shape: f32[2,4,1], index: 1, kind: input, shape index: {}]
  %s2 = inlined_call_operand.vmem [shape: f32[2,4,1], index: 2, kind: input, shape index: {}]
  %s3 = inlined_call_operand.hbm [shape: f32[2,4,256], index: 3, kind: output, shape index: {}]
  %s4 = sld [smem:[#allocation0]]
  $region22: #{tpu_custom_call.1} parent=0
    _
  %s6 = ssub.s32 1, %s4
  %s7 = scalar_select 0, %s6, %s4
  $region1: #{tpu_custom_call.1} parent=0
    #allocation2 [shape = 'u8[8192]{0}', space=vmem, size = 0x2000, scoped, tag = 'output window, operand 0, single buffered']
    #allocation3 [shape = 's32[1]{0}', space=sflag, size = 0x4, scoped, tag = 'scoped memory for tpu_custom_call.1']
    %8 = vsyncpa [#allocation3], 0
    // Predicated region
    $region2: #{tpu_custom_call.1} parent=1 // pred_check
      _
    $region3: #{tpu_custom_call.1} parent=1 // pred_check_branch
      %10 = sbr.rel (0) target = $region5
    $region4: #{tpu_custom_call.1} parent=1 // pred_region
      _
    $region5: #{tpu_custom_call.1} parent=1 // pred_fallthru
      _
    // Predicated region
    $region6: #{tpu_custom_call.1} parent=1 // pred_check
      _
    $region7: #{tpu_custom_call.1} parent=1 // pred_check_branch
      %12 = sbr.rel (0) target = $region9
    $region8: #{tpu_custom_call.1} parent=1 // pred_region
      _
    $region9: #{tpu_custom_call.1} parent=1 // pred_fallthru
      _
    // Predicated region
    $region10: #{tpu_custom_call.1} parent=1 // pred_check
      _
    $region11: #{tpu_custom_call.1} parent=1 // pred_check_branch
      %14 = sbr.rel (0) target = $region13
    $region12: #{tpu_custom_call.1} parent=1 // pred_region
      _
    $region13: #{tpu_custom_call.1} parent=1 // pred_fallthru
      _
    %v15 = vld [vmem:[%s0] sm:$0xff]
    %v16 = vld [vmem:[%s0 + $0x8] sm:$0xff]
    %19 = vst [vmem:[#allocation1] ss:$2 sm:$0xff] %v15
    %v20 = vld.sshfl [vmem:[#allocation1] sm:$0xff pattern:$0x75316420]
    %v21 = vld.sshfl [vmem:[#allocation1 + $0x8] sm:$0xff pattern:$0x75316420]
    %s22 = scalar_lea.vmem [#allocation1], 16
    %23 = vst [vmem:[%s22] ss:$2 sm:$0xff] %v16
    %v24 = vld.sshfl [vmem:[#allocation1 + $0x10] sm:$0xff pattern:$0x75316420]
    %v25 = vld.sshfl [vmem:[#allocation1 + $0x18] sm:$0xff pattern:$0x75316420]
    %vm30 = vcmask 1043456
    %v31 = vsel %vm30, %v20, 0.0
    %v32 = vsel %vm30, %v21, 0.0
    %v33 = vadd.f32 %v31, %v32
    %v34 = vsel %vm30, %v24, 0.0
    %v35 = vadd.f32 %v33, %v34
    %v36 = vsel %vm30, %v25, 0.0
    %v37 = vadd.f32 %v35, %v36
    %38 = vadd.xlane.f32.xlu0 %v37
    %v39 = vpop.xlane.xlu0 %38
    %v40 = vrcp.pop 512.0
    %v41 = vmul.f32 512.0, %v40
    %v42 = vsub.f32 1.0, %v41
    %v43 = vmul.f32 %v40, %v42
    %v44 = vadd.f32 %v40, %v43
    %vm45 = vweird.f32 %v40
    %v46 = vsel %vm45, %v40, %v44
    %v47 = vmul.f32 %v39, %v46
    %v50 = vunpack.c.l.s4 839922192
    %v51 = vunpack.c.0.s8 %v50
    %v52 = vperm.slane %v47, %v51
    %v54 = vsub.f32 %v15, %v52
    %v55 = vsub.f32 %v16, %v52
    %v56 = vmul.f32 %v54, %v54
    %v57 = vmul.f32 %v55, %v55
    %60 = vst [vmem:[#allocation1] ss:$2 sm:$0xff] %v56
    %v61 = vld.sshfl [vmem:[#allocation1] sm:$0xff pattern:$0x75316420]
    %v62 = vld.sshfl [vmem:[#allocation1 + $0x8] sm:$0xff pattern:$0x75316420]
    %s63 = scalar_lea.vmem [#allocation1], 16
    %64 = vst [vmem:[%s63] ss:$2 sm:$0xff] %v57
    %v65 = vld.sshfl [vmem:[#allocation1 + $0x10] sm:$0xff pattern:$0x75316420]
    %v66 = vld.sshfl [vmem:[#allocation1 + $0x18] sm:$0xff pattern:$0x75316420]
    %v71 = vsel %vm30, %v61, 0.0
    %v72 = vsel %vm30, %v62, 0.0
    %v73 = vadd.f32 %v71, %v72
    %v74 = vsel %vm30, %v65, 0.0
    %v75 = vadd.f32 %v73, %v74
    %v76 = vsel %vm30, %v66, 0.0
    %v77 = vadd.f32 %v75, %v76
    %78 = vadd.xlane.f32.xlu0 %v77
    %v79 = vpop.xlane.xlu0 %78
    %v80 = vmul.f32 %v79, %v46
    %v81 = vadd.f32 %v80, 1e-05
    %v82 = vrsqrt.pop %v81
    %v83 = vmul.f32 %v82, %v81
    %v84 = vmul.f32 %v83, %v82
    %v85 = vmul.f32 0.5, %v84
    %v86 = vsub.f32 1.5, %v85
    %v87 = vmul.f32 %v82, %v86
    %vm88 = vweird.f32 %v81
    %vm89 = vweird.f32 %v82
    %vm90 = vmor %vm88, %vm89
    %v91 = vsel %vm90, %v82, %v87
    %v92 = vld [vmem:[%s1] sm:$0xf]
    %v93 = vld [vmem:[%s1 + $0x4] sm:$0xf]
    %v94 = vmul.f32 %v92, %v91
    %v95 = vmul.f32 %v93, %v91
    %97 = vset.pattern.permute.xlu0 0
    %98 = vperm.xlu0 %97, %v94
    %v99 = vpop.permute.xlu0 %98
    %101 = vset.pattern.permute.xlu0 0
    %102 = vperm.xlu0 %101, %v95
    %v103 = vpop.permute.xlu0 %102
    %v105 = vunpack.c.l.s4 839922192
    %v106 = vunpack.c.0.s8 %v105
    %v107 = vperm.slane %v99, %v106
    %v109 = vunpack.c.l.s4 839922192
    %v110 = vunpack.c.0.s8 %v109
    %v111 = vperm.slane %v103, %v110
    %v114 = vmul.f32 %v54, %v107
    %v115 = vmul.f32 %v55, %v111
    %v116 = vld [vmem:[%s2] sm:$0xf]
    %v117 = vld [vmem:[%s2 + $0x4] sm:$0xf]
    %119 = vset.pattern.permute.xlu0 0
    %120 = vperm.xlu0 %119, %v116
    %v121 = vpop.permute.xlu0 %120
    %123 = vset.pattern.permute.xlu0 0
    %124 = vperm.xlu0 %123, %v117
    %v125 = vpop.permute.xlu0 %124
    %v127 = vunpack.c.l.s4 839922192
    %v128 = vunpack.c.0.s8 %v127
    %v129 = vperm.slane %v121, %v128
    %v131 = vunpack.c.l.s4 839922192
    %v132 = vunpack.c.0.s8 %v131
    %v133 = vperm.slane %v125, %v132
    %v136 = vadd.f32 %v114, %v129
    %v137 = vadd.f32 %v115, %v133
    %138 = vst [vmem:[#allocation2] sm:$0xff] %v136
    %139 = vst [vmem:[#allocation2 + $0x8] sm:$0xff] %v137
    // Predicated region
    $region14: #{tpu_custom_call.1} parent=1 // pred_check
      _
    $region15: #{tpu_custom_call.1} parent=1 // pred_check_branch
      %141 = sbr.rel (0) target = $region17
    $region16: #{tpu_custom_call.1} parent=1 // pred_region
      %143 = vsyncadd [#allocation3], 0
      %s144 = sshll.u32 [#allocation2], 4
      %s145 = int_to_ptr.vmem [resolvable:$true] %s144
      %s146 = sshll.u32 %s3, 4
      %s147 = int_to_ptr.hbm [resolvable:$true] %s146
      %152 = dma.vmem_to_hbm [thread:$0]  %s145, 256, %s147, [#allocation3], 128, 128, 8
    $region17: #{tpu_custom_call.1} parent=1 // pred_fallthru
      _
    // Predicated region
    $region18: #{tpu_custom_call.1} parent=1 // pred_check
      _
    $region19: #{tpu_custom_call.1} parent=1 // pred_check_branch
      %154 = sbr.rel (0) target = $region21
    $region20: #{tpu_custom_call.1} parent=1 // pred_region
      %156 = dma.done [#allocation3], 256
    $region21: #{tpu_custom_call.1} parent=1 // pred_fallthru
      _
    %157 = vsyncpa [#allocation3], 1

</llo_original>
